<compile_context>
chip_gen: v7x
topology: tpu7x:2x2x1
jax: 0.10.0
libtpu: 0.0.40
codegen_flags: <defaults>
</compile_context>

<pallas_src>
import functools

import jax
import jax.numpy as jnp
import numpy as np
from jax.experimental import pallas as pl
from jax.experimental.pallas import tpu as pltpu


def _ccta_kernel(x_ref, o_ref, *, C, H):
    """x_ref / o_ref: (Nb, C*H, W) row-flat block (Nb batch elements).

    Flat row index f = c*H + h.  Output rows for "output channel" c2 are the
    contiguous range [c2*H, (c2+1)*H); their branch-"a" sources are the
    stride-C rows {h2*C + c2 : h2 in [0, H)} (the (C,H) relabel).
    """
    for c2 in range(C):  # static, C is small -> unrolled
        lo = c2 * H
        # Contiguous rows of original channel c2 (for branch "b" and the tail).
        xb = x_ref[:, lo:lo + H, :].astype(jnp.float32)               # (Nb, H, W)
        # Sublane-strided gather of the rows whose softmax-over-W lands at
        # output channel c2 after the relabel (branch "a").
        xa = x_ref[:, pl.ds(c2, H, stride=C), :].astype(jnp.float32)  # (Nb, H, W)

        # branch "b": softmax over H (sublane-axis reduction).
        eh = jnp.exp(xb - jnp.max(xb, axis=-2, keepdims=True))
        b_c = eh * pl.reciprocal(jnp.sum(eh, axis=-2, keepdims=True), approx=True)

        # branch "a": softmax over W (lane-axis reduction).
        ew = jnp.exp(xa - jnp.max(xa, axis=-1, keepdims=True))
        a_c = ew * pl.reciprocal(jnp.sum(ew, axis=-1, keepdims=True), approx=True)

        # Fused tail; ACD gate == identity, so output is the knowledge layer.
        A = jnp.exp(a_c * b_c)
        M = jnp.maximum(a_c, b_c)
        o_ref[:, lo:lo + H, :] = (A + M + xb).astype(o_ref.dtype)


def _block_target_bytes():
    """Per-block byte target, generation aware (bigger on 128 MiB-VMEM chips)."""
    try:
        vmem = pltpu.get_tpu_info().vmem_capacity_bytes
    except Exception:
        return 2 << 20
    return (4 << 20) if vmem >= (96 << 20) else (2 << 20)


def _pick_nb(N, per_elem_bytes, target_bytes):
    """Largest divisor of N such that a block stays under target_bytes and the
    grid keeps >= 2 steps (v7x megacore + double-buffered pipeline)."""
    cap = max(1, target_bytes // max(1, per_elem_bytes))
    if N >= 2:
        cap = min(cap, N // 2)
    cap = max(1, min(cap, N))
    for d in range(cap, 0, -1):
        if N % d == 0:
            return d
    return 1


@jax.jit
def ccta_forward(inputs):
    """inputs: (N, C, H, W) float32. Returns (N, C, H, W) float32."""
    N, C, H, W = inputs.shape
    # The free row-merge reshapes and aligned per-channel row slabs assume the
    # f32 sublane tile divides H.
    assert H % 8 == 0, "CCTA Pallas kernel assumes H % 8 == 0"

    R = C * H
    itemsize = jnp.dtype(inputs.dtype).itemsize
    nb = _pick_nb(N, C * H * W * itemsize, _block_target_bytes())
    numel = N * C * H * W

    x_flat = inputs.reshape(N, R, W)                 # free contiguous reshape
    spec = pl.BlockSpec((nb, R, W), lambda i: (i, 0, 0))

    out = pl.pallas_call(
        functools.partial(_ccta_kernel, C=C, H=H),
        out_shape=jax.ShapeDtypeStruct((N, R, W), inputs.dtype),
        grid=(N // nb,),
        in_specs=[spec],
        out_specs=spec,
        compiler_params=pltpu.CompilerParams(
            # One batch chunk per grid step; "parallel" lets v7x shard the
            # batch across its two TensorCores (near no-op on v5e/v6e).
            dimension_semantics=("parallel",),
            # Blocks are capped at ~2-4 MiB; 32 MiB leaves ample room for the
            # double-buffered in/out pairs on every generation (incl. v7x).
            vmem_limit_bytes=32 * 1024 * 1024,
        ),
        cost_estimate=pl.CostEstimate(
            flops=10 * numel,
            transcendentals=3 * numel,
            bytes_accessed=2 * numel * itemsize,
        ),
    )(x_flat)
    return out.reshape(N, C, H, W)


def _reference(inputs, thr=0.8):
    """Pure-JAX reference of the PyTorch semantics (incl. the full ACD gate)."""
    N, C, H, W = inputs.shape
    sa = jax.nn.softmax(inputs, axis=-1)
    sb = jax.nn.softmax(inputs, axis=-2)
    a_probs = sa.reshape(N, C * H, W).reshape(N, H, C, W).transpose(0, 2, 1, 3)
    b_probs = sb
    A = jnp.exp(a_probs * b_probs)
    M = jnp.maximum(a_probs, b_probs)
    K = A + M + inputs
    cos1 = jnp.sqrt(A * A) * jnp.sqrt(M * M)
    cosin1 = (A * M) / cos1
    Y = jnp.where(cosin1 > thr, 1.0, 0.0)
    return Y * K


if __name__ == "__main__":
    key = jax.random.PRNGKey(0)
    N, C, H, W = 2, 4, 16, 16
    x = jax.random.normal(key, (N, C, H, W), dtype=jnp.float32)

    out = jax.block_until_ready(ccta_forward(x))
    ref = jax.block_until_ready(_reference(x))

    # Tolerance covers the EUP approximate reciprocal in the softmax
    # normalisation (~1e-3 relative); structural errors (wrong softmax axis or
    # wrong (C,H) relabel) would show up as O(0.1) discrepancies.
    np.testing.assert_allclose(np.asarray(out), np.asarray(ref), rtol=5e-3, atol=5e-3)
    print("KERNEL_OK")
</pallas_src>

<mosaic_0001>
module attributes {stable_mosaic.version = 11 : i64} {
  func.func @_ccta_kernel(%arg0: i32, %arg1: memref<1x64x16xf32, #tpu.memory_space<vmem>>, %arg2: memref<1x64x16xf32, #tpu.memory_space<vmem>>) attributes {dimension_semantics = [#tpu.dimension_semantics<parallel>], iteration_bounds = array<i64: 2>, scalar_prefetch = 0 : i64, scratch_operands = 0 : i64, tpu.core_type = #tpu.core_type<tc>, window_params = [{transform_indices = @transform_0, window_bounds = array<i64: 1, 64, 16>}, {transform_indices = @transform_1, window_bounds = array<i64: 1, 64, 16>}]} {
    %c0 = arith.constant 0 : index
    %c0_0 = arith.constant 0 : index
    %c0_1 = arith.constant 0 : index
    %0 = vector.load %arg1[%c0, %c0_0, %c0_1] : memref<1x64x16xf32, #tpu.memory_space<vmem>>, vector<1x16x16xf32>
    %c0_2 = arith.constant 0 : index
    %c0_3 = arith.constant 0 : index
    %c0_4 = arith.constant 0 : index
    %1 = tpu.strided_load %arg1[%c0_2, %c0_3, %c0_4] {strides = array<i32: 1, 4, 1>} : memref<1x64x16xf32, #tpu.memory_space<vmem>>, vector<1x16x16xf32>
    %cst = arith.constant dense<0xFF800000> : vector<1x16xf32>
    %2 = vector.multi_reduction <maximumf>, %0, %cst [1] : vector<1x16x16xf32> to vector<1x16xf32>
    %3 = vector.shape_cast %2 : vector<1x16xf32> to vector<1x1x16xf32>
    %4 = vector.broadcast %3 : vector<1x1x16xf32> to vector<1x16x16xf32>
    %5 = arith.subf %0, %4 : vector<1x16x16xf32>
    %6 = math.exp %5 : vector<1x16x16xf32>
    %cst_5 = arith.constant dense<0.000000e+00> : vector<1x16xf32>
    %7 = vector.multi_reduction <add>, %6, %cst_5 [1] : vector<1x16x16xf32> to vector<1x16xf32>
    %8 = vector.shape_cast %7 : vector<1x16xf32> to vector<1x1x16xf32>
    %9 = tpu.reciprocal %8 {approx = true} : vector<1x1x16xf32> -> vector<1x1x16xf32>
    %10 = vector.broadcast %9 : vector<1x1x16xf32> to vector<1x16x16xf32>
    %11 = arith.mulf %6, %10 : vector<1x16x16xf32>
    %cst_6 = arith.constant dense<0xFF800000> : vector<1x16xf32>
    %12 = vector.multi_reduction <maximumf>, %1, %cst_6 [2] : vector<1x16x16xf32> to vector<1x16xf32>
    %13 = vector.shape_cast %12 : vector<1x16xf32> to vector<1x16x1xf32>
    %14 = vector.broadcast %13 : vector<1x16x1xf32> to vector<1x16x16xf32>
    %15 = arith.subf %1, %14 : vector<1x16x16xf32>
    %16 = math.exp %15 : vector<1x16x16xf32>
    %cst_7 = arith.constant dense<0.000000e+00> : vector<1x16xf32>
    %17 = vector.multi_reduction <add>, %16, %cst_7 [2] : vector<1x16x16xf32> to vector<1x16xf32>
    %18 = vector.shape_cast %17 : vector<1x16xf32> to vector<1x16x1xf32>
    %19 = tpu.reciprocal %18 {approx = true} : vector<1x16x1xf32> -> vector<1x16x1xf32>
    %20 = vector.broadcast %19 : vector<1x16x1xf32> to vector<1x16x16xf32>
    %21 = arith.mulf %16, %20 : vector<1x16x16xf32>
    %22 = arith.mulf %21, %11 : vector<1x16x16xf32>
    %23 = math.exp %22 : vector<1x16x16xf32>
    %24 = arith.maximumf %21, %11 : vector<1x16x16xf32>
    %25 = arith.addf %23, %24 : vector<1x16x16xf32>
    %26 = arith.addf %25, %0 : vector<1x16x16xf32>
    %c0_8 = arith.constant 0 : index
    %c0_9 = arith.constant 0 : index
    %c0_10 = arith.constant 0 : index
    %27 = vector.load %arg2[%c0_8, %c0_9, %c0_10] : memref<1x64x16xf32, #tpu.memory_space<vmem>>, vector<1x16x16xf32>
    tpu.vector_store %arg2[%c0_8, %c0_9, %c0_10], %26 {strides = array<i32>} : memref<1x64x16xf32, #tpu.memory_space<vmem>>, vector<1x16x16xf32>,
    %c0_11 = arith.constant 0 : index
    %c16 = arith.constant 16 : index
    %c0_12 = arith.constant 0 : index
    %28 = vector.load %arg1[%c0_11, %c16, %c0_12] : memref<1x64x16xf32, #tpu.memory_space<vmem>>, vector<1x16x16xf32>
    %c0_13 = arith.constant 0 : index
    %c1 = arith.constant 1 : index
    %c0_14 = arith.constant 0 : index
    %29 = tpu.strided_load %arg1[%c0_13, %c1, %c0_14] {strides = array<i32: 1, 4, 1>} : memref<1x64x16xf32, #tpu.memory_space<vmem>>, vector<1x16x16xf32>
    %cst_15 = arith.constant dense<0xFF800000> : vector<1x16xf32>
    %30 = vector.multi_reduction <maximumf>, %28, %cst_15 [1] : vector<1x16x16xf32> to vector<1x16xf32>
    %31 = vector.shape_cast %30 : vector<1x16xf32> to vector<1x1x16xf32>
    %32 = vector.broadcast %31 : vector<1x1x16xf32> to vector<1x16x16xf32>
    %33 = arith.subf %28, %32 : vector<1x16x16xf32>
    %34 = math.exp %33 : vector<1x16x16xf32>
    %cst_16 = arith.constant dense<0.000000e+00> : vector<1x16xf32>
    %35 = vector.multi_reduction <add>, %34, %cst_16 [1] : vector<1x16x16xf32> to vector<1x16xf32>
    %36 = vector.shape_cast %35 : vector<1x16xf32> to vector<1x1x16xf32>
    %37 = tpu.reciprocal %36 {approx = true} : vector<1x1x16xf32> -> vector<1x1x16xf32>
    %38 = vector.broadcast %37 : vector<1x1x16xf32> to vector<1x16x16xf32>
    %39 = arith.mulf %34, %38 : vector<1x16x16xf32>
    %cst_17 = arith.constant dense<0xFF800000> : vector<1x16xf32>
    %40 = vector.multi_reduction <maximumf>, %29, %cst_17 [2] : vector<1x16x16xf32> to vector<1x16xf32>
    %41 = vector.shape_cast %40 : vector<1x16xf32> to vector<1x16x1xf32>
    %42 = vector.broadcast %41 : vector<1x16x1xf32> to vector<1x16x16xf32>
    %43 = arith.subf %29, %42 : vector<1x16x16xf32>
    %44 = math.exp %43 : vector<1x16x16xf32>
    %cst_18 = arith.constant dense<0.000000e+00> : vector<1x16xf32>
    %45 = vector.multi_reduction <add>, %44, %cst_18 [2] : vector<1x16x16xf32> to vector<1x16xf32>
    %46 = vector.shape_cast %45 : vector<1x16xf32> to vector<1x16x1xf32>
    %47 = tpu.reciprocal %46 {approx = true} : vector<1x16x1xf32> -> vector<1x16x1xf32>
    %48 = vector.broadcast %47 : vector<1x16x1xf32> to vector<1x16x16xf32>
    %49 = arith.mulf %44, %48 : vector<1x16x16xf32>
    %50 = arith.mulf %49, %39 : vector<1x16x16xf32>
    %51 = math.exp %50 : vector<1x16x16xf32>
    %52 = arith.maximumf %49, %39 : vector<1x16x16xf32>
    %53 = arith.addf %51, %52 : vector<1x16x16xf32>
    %54 = arith.addf %53, %28 : vector<1x16x16xf32>
    %c0_19 = arith.constant 0 : index
    %c16_20 = arith.constant 16 : index
    %c0_21 = arith.constant 0 : index
    %55 = vector.load %arg2[%c0_19, %c16_20, %c0_21] : memref<1x64x16xf32, #tpu.memory_space<vmem>>, vector<1x16x16xf32>
    tpu.vector_store %arg2[%c0_19, %c16_20, %c0_21], %54 {strides = array<i32>} : memref<1x64x16xf32, #tpu.memory_space<vmem>>, vector<1x16x16xf32>,
    %c0_22 = arith.constant 0 : index
    %c32 = arith.constant 32 : index
    %c0_23 = arith.constant 0 : index
    %56 = vector.load %arg1[%c0_22, %c32, %c0_23] : memref<1x64x16xf32, #tpu.memory_space<vmem>>, vector<1x16x16xf32>
    %c0_24 = arith.constant 0 : index
    %c2 = arith.constant 2 : index
    %c0_25 = arith.constant 0 : index
    %57 = tpu.strided_load %arg1[%c0_24, %c2, %c0_25] {strides = array<i32: 1, 4, 1>} : memref<1x64x16xf32, #tpu.memory_space<vmem>>, vector<1x16x16xf32>
    %cst_26 = arith.constant dense<0xFF800000> : vector<1x16xf32>
    %58 = vector.multi_reduction <maximumf>, %56, %cst_26 [1] : vector<1x16x16xf32> to vector<1x16xf32>
    %59 = vector.shape_cast %58 : vector<1x16xf32> to vector<1x1x16xf32>
    %60 = vector.broadcast %59 : vector<1x1x16xf32> to vector<1x16x16xf32>
    %61 = arith.subf %56, %60 : vector<1x16x16xf32>
    %62 = math.exp %61 : vector<1x16x16xf32>
    %cst_27 = arith.constant dense<0.000000e+00> : vector<1x16xf32>
    %63 = vector.multi_reduction <add>, %62, %cst_27 [1] : vector<1x16x16xf32> to vector<1x16xf32>
    %64 = vector.shape_cast %63 : vector<1x16xf32> to vector<1x1x16xf32>
    %65 = tpu.reciprocal %64 {approx = true} : vector<1x1x16xf32> -> vector<1x1x16xf32>
    %66 = vector.broadcast %65 : vector<1x1x16xf32> to vector<1x16x16xf32>
    %67 = arith.mulf %62, %66 : vector<1x16x16xf32>
    %cst_28 = arith.constant dense<0xFF800000> : vector<1x16xf32>
    %68 = vector.multi_reduction <maximumf>, %57, %cst_28 [2] : vector<1x16x16xf32> to vector<1x16xf32>
    %69 = vector.shape_cast %68 : vector<1x16xf32> to vector<1x16x1xf32>
    %70 = vector.broadcast %69 : vector<1x16x1xf32> to vector<1x16x16xf32>
    %71 = arith.subf %57, %70 : vector<1x16x16xf32>
    %72 = math.exp %71 : vector<1x16x16xf32>
    %cst_29 = arith.constant dense<0.000000e+00> : vector<1x16xf32>
    %73 = vector.multi_reduction <add>, %72, %cst_29 [2] : vector<1x16x16xf32> to vector<1x16xf32>
    %74 = vector.shape_cast %73 : vector<1x16xf32> to vector<1x16x1xf32>
    %75 = tpu.reciprocal %74 {approx = true} : vector<1x16x1xf32> -> vector<1x16x1xf32>
    %76 = vector.broadcast %75 : vector<1x16x1xf32> to vector<1x16x16xf32>
    %77 = arith.mulf %72, %76 : vector<1x16x16xf32>
    %78 = arith.mulf %77, %67 : vector<1x16x16xf32>
    %79 = math.exp %78 : vector<1x16x16xf32>
    %80 = arith.maximumf %77, %67 : vector<1x16x16xf32>
    %81 = arith.addf %79, %80 : vector<1x16x16xf32>
    %82 = arith.addf %81, %56 : vector<1x16x16xf32>
    %c0_30 = arith.constant 0 : index
    %c32_31 = arith.constant 32 : index
    %c0_32 = arith.constant 0 : index
    %83 = vector.load %arg2[%c0_30, %c32_31, %c0_32] : memref<1x64x16xf32, #tpu.memory_space<vmem>>, vector<1x16x16xf32>
    tpu.vector_store %arg2[%c0_30, %c32_31, %c0_32], %82 {strides = array<i32>} : memref<1x64x16xf32, #tpu.memory_space<vmem>>, vector<1x16x16xf32>,
    %c0_33 = arith.constant 0 : index
    %c48 = arith.constant 48 : index
    %c0_34 = arith.constant 0 : index
    %84 = vector.load %arg1[%c0_33, %c48, %c0_34] : memref<1x64x16xf32, #tpu.memory_space<vmem>>, vector<1x16x16xf32>
    %c0_35 = arith.constant 0 : index
    %c3 = arith.constant 3 : index
    %c0_36 = arith.constant 0 : index
    %85 = tpu.strided_load %arg1[%c0_35, %c3, %c0_36] {strides = array<i32: 1, 4, 1>} : memref<1x64x16xf32, #tpu.memory_space<vmem>>, vector<1x16x16xf32>
    %cst_37 = arith.constant dense<0xFF800000> : vector<1x16xf32>
    %86 = vector.multi_reduction <maximumf>, %84, %cst_37 [1] : vector<1x16x16xf32> to vector<1x16xf32>
    %87 = vector.shape_cast %86 : vector<1x16xf32> to vector<1x1x16xf32>
    %88 = vector.broadcast %87 : vector<1x1x16xf32> to vector<1x16x16xf32>
    %89 = arith.subf %84, %88 : vector<1x16x16xf32>
    %90 = math.exp %89 : vector<1x16x16xf32>
    %cst_38 = arith.constant dense<0.000000e+00> : vector<1x16xf32>
    %91 = vector.multi_reduction <add>, %90, %cst_38 [1] : vector<1x16x16xf32> to vector<1x16xf32>
    %92 = vector.shape_cast %91 : vector<1x16xf32> to vector<1x1x16xf32>
    %93 = tpu.reciprocal %92 {approx = true} : vector<1x1x16xf32> -> vector<1x1x16xf32>
    %94 = vector.broadcast %93 : vector<1x1x16xf32> to vector<1x16x16xf32>
    %95 = arith.mulf %90, %94 : vector<1x16x16xf32>
    %cst_39 = arith.constant dense<0xFF800000> : vector<1x16xf32>
    %96 = vector.multi_reduction <maximumf>, %85, %cst_39 [2] : vector<1x16x16xf32> to vector<1x16xf32>
    %97 = vector.shape_cast %96 : vector<1x16xf32> to vector<1x16x1xf32>
    %98 = vector.broadcast %97 : vector<1x16x1xf32> to vector<1x16x16xf32>
    %99 = arith.subf %85, %98 : vector<1x16x16xf32>
    %100 = math.exp %99 : vector<1x16x16xf32>
    %cst_40 = arith.constant dense<0.000000e+00> : vector<1x16xf32>
    %101 = vector.multi_reduction <add>, %100, %cst_40 [2] : vector<1x16x16xf32> to vector<1x16xf32>
    %102 = vector.shape_cast %101 : vector<1x16xf32> to vector<1x16x1xf32>
    %103 = tpu.reciprocal %102 {approx = true} : vector<1x16x1xf32> -> vector<1x16x1xf32>
    %104 = vector.broadcast %103 : vector<1x16x1xf32> to vector<1x16x16xf32>
    %105 = arith.mulf %100, %104 : vector<1x16x16xf32>
    %106 = arith.mulf %105, %95 : vector<1x16x16xf32>
    %107 = math.exp %106 : vector<1x16x16xf32>
    %108 = arith.maximumf %105, %95 : vector<1x16x16xf32>
    %109 = arith.addf %107, %108 : vector<1x16x16xf32>
    %110 = arith.addf %109, %84 : vector<1x16x16xf32>
    %c0_41 = arith.constant 0 : index
    %c48_42 = arith.constant 48 : index
    %c0_43 = arith.constant 0 : index
    %111 = vector.load %arg2[%c0_41, %c48_42, %c0_43] : memref<1x64x16xf32, #tpu.memory_space<vmem>>, vector<1x16x16xf32>
    tpu.vector_store %arg2[%c0_41, %c48_42, %c0_43], %110 {strides = array<i32>} : memref<1x64x16xf32, #tpu.memory_space<vmem>>, vector<1x16x16xf32>,
    return
  }
  func.func @transform_0(%arg0: i32) -> (i32, i32, i32) {
    %c0_i32 = arith.constant 0 : i32
    %c0_i32_0 = arith.constant 0 : i32
    %c0_i32_1 = arith.constant 0 : i32
    return %arg0, %c0_i32, %c0_i32_0 : i32, i32, i32
  }
  func.func @transform_1(%arg0: i32) -> (i32, i32, i32) {
    %c0_i32 = arith.constant 0 : i32
    %c0_i32_0 = arith.constant 0 : i32
    %c0_i32_1 = arith.constant 0 : i32
    return %arg0, %c0_i32, %c0_i32_0 : i32, i32, i32
  }
}

</mosaic_0001>

<llo_original>
// kernel: ccta_forward.1
$region0: #{ccta_forward.1}
  #allocation0 [shape = 'u32[]', space=smem, size = 0x4, offset = 0x4, fixed_abs, tag = 'smem constant byte address 0x4 - core index']
  #allocation1 [shape = 'u32[144,128]{1,0:T(1,128)}', space=vmem, size = 0x12000, scoped, tag = 'internal scratch']
  %s0 = inlined_call_operand.hbm [shape: f32[2,64,16], index: 0, kind: input, shape index: {}]
  %s1 = inlined_call_operand.hbm [shape: f32[2,64,16], index: 1, kind: output, shape index: {}]
  %s2 = sld [smem:[#allocation0]]
  $region41: #{ccta_forward.1} parent=0
    _
  %s4 = ssub.s32 1, %s2
  %s5 = scalar_select 0, %s4, %s2
  $region1: #{ccta_forward.1} parent=0
    #allocation2 [shape = 'u8[65536]{0}', space=vmem, size = 0x10000, scoped, tag = 'input window, operand 0']
    #allocation3 [shape = 's32[2]{0}', space=sflag, size = 0x8, scoped, tag = 'scoped memory for ccta_forward.1']
    #allocation4 [shape = 's32[2]{0}', space=sflag, size = 0x8, scoped, tag = 'scoped memory for ccta_forward.1']
    #allocation5 [shape = 'u8[65536]{0}', space=vmem, size = 0x10000, scoped, tag = 'output window, operand 0']
    %6 = vsyncpa [#allocation3], 0
    %s7 = scalar_lea.sflag [#allocation3], 1
    %8 = vsyncpa %s7, 0
    %9 = vsyncpa [#allocation4], 0
    %s10 = scalar_lea.sflag [#allocation4], 1
    %11 = vsyncpa %s10, 0
    loop: start=0, step=1, limit=4
    $region2: #{ccta_forward.1} parent=1 // loop_pre_header
      _
    $region3: #{ccta_forward.1} parent=1 // loop_header
      %s13 = sphi 0, %s17
      %p14 = scmp.ge.s32.totalorder %s13, 4
      %s23 = sphi 0, %s25
      %s26 = sphi 0, %s23
      %s27 = sphi 0, %s26
      %s43 = sphi 0, %s27
      %s49 = sphi 0, %s51
      %s52 = sphi 0, %s49
      %s53 = sphi 0, %s52
      %s69 = sphi 0, %s53
    $region4: #{ccta_forward.1} parent=1 // loop_header_branch
      %16 = sbr.rel (%p14) target = $region8
    $region5: #{ccta_forward.1} parent=1 // loop_body
      %s18 = ssub.s32 %s13, 1
      %s19 = ssub.s32 %s13, 2
      %s20 = sadd.s32 %s13, 1
      %s21 = ssub.s32 %s13, %s20
      %p22 = scmp.eq.s32.totalorder %s21, 0
      %s24 = sadd.s32 %s23, 1
      %s25 = scalar_select %p22, %s23, %s24
      %p28 = pneg %p22
      %p29 = scmp.eq.s32.totalorder %s13, 1
      %p30 = por %p28, %p29
      %p31 = scmp.ne.s32.totalorder %s23, %s26
      %p32 = scmp.eq.s32.totalorder %s13, 0
      %p33 = por %p31, %p32
      %p34 = scmp.ne.s32.totalorder %s23, %s26
      %p35 = scmp.eq.s32.totalorder %s18, 1
      %p36 = por %p34, %p35
      %p37 = scmp.ne.s32.totalorder %s26, %s27
      %p38 = scmp.eq.s32.totalorder %s18, 0
      %p39 = por %p37, %p38
      %p40 = scmp.ne.s32.totalorder %s26, %s27
      %p41 = scmp.eq.s32.totalorder %s19, 1
      %p42 = por %p40, %p41
      %p44 = scmp.ne.s32.totalorder %s27, %s43
      %p45 = scmp.eq.s32.totalorder %s19, 0
      %p46 = por %p44, %p45
      %s47 = ssub.s32 %s13, %s20
      %p48 = scmp.eq.s32.totalorder %s47, 0
      %s50 = sadd.s32 %s49, 1
      %s51 = scalar_select %p48, %s49, %s50
      %p54 = pneg %p48
      %p55 = scmp.eq.s32.totalorder %s13, 1
      %p56 = por %p54, %p55
      %p57 = scmp.ne.s32.totalorder %s49, %s52
      %p58 = scmp.eq.s32.totalorder %s13, 0
      %p59 = por %p57, %p58
      %p60 = scmp.ne.s32.totalorder %s49, %s52
      %p61 = scmp.eq.s32.totalorder %s18, 1
      %p62 = por %p60, %p61
      %p63 = scmp.ne.s32.totalorder %s52, %s53
      %p64 = scmp.eq.s32.totalorder %s18, 0
      %p65 = por %p63, %p64
      %p66 = scmp.ne.s32.totalorder %s52, %s53
      %p67 = scmp.eq.s32.totalorder %s19, 1
      %p68 = por %p66, %p67
      %p70 = scmp.ne.s32.totalorder %s53, %s69
      %p71 = scmp.eq.s32.totalorder %s19, 0
      %p72 = por %p70, %p71
      %p73 = scmp.le.s32.totalorder 1, %s13
      %p74 = scmp.lt.s32.totalorder %s13, 3
      %p75 = pnand %p73, %p74
      %p76 = pneg %p75
      // Predicated region
      $region9: #{ccta_forward.1} parent=5 // pred_check
        _
      $region10: #{ccta_forward.1} parent=5 // pred_check_branch
        %78 = sbr.rel (%p75) target = $region12
      $region11: #{ccta_forward.1} parent=5 // pred_region
        %s79 = ssub.s32 %s13, 1
      $region12: #{ccta_forward.1} parent=5 // pred_fallthru
        _
      %p80 = scmp.lt.s32.totalorder %s13, 2
      // Predicated region
      $region13: #{ccta_forward.1} parent=5 // pred_check
        %p81 = pneg %p80
      $region14: #{ccta_forward.1} parent=5 // pred_check_branch
        %83 = sbr.rel (%p81) target = $region16
      $region15: #{ccta_forward.1} parent=5 // pred_region
        // Predicated region
        $region17: #{ccta_forward.1} parent=15 // pred_check
          %p84 = pneg %p33
        $region18: #{ccta_forward.1} parent=15 // pred_check_branch
          %86 = sbr.rel (%p84) target = $region20
        $region19: #{ccta_forward.1} parent=15 // pred_region
          %s87 = sand.u32 %s23, 1
          %s88 = scalar_lea.sflag [#allocation3], %s87
          %s89 = sand.u32 %s23, 1
          %s90 = smul.addr %s89, 64
          %s91 = scalar_lea.vmem [#allocation2], %s90
          %s93 = ssub.s32 1024, 1024
          %94 = vsyncadd %s88, %s93
          %s95 = smul.addr %s13, 8
          %s96 = smul.addr %s95, 128
          %s97 = scalar_lea.hbm %s0, %s96
          %s98 = sshll.u32 %s91, 4
          %s99 = int_to_ptr.vmem [resolvable:$true] %s98
          %104 = dma.hbm_to_vmem [thread:$0]  %s97, 1024, %s99, %s88, 128, 128, 8
        $region20: #{ccta_forward.1} parent=15 // pred_fallthru
          _
      $region16: #{ccta_forward.1} parent=5 // pred_fallthru
        _
      %p105 = scmp.le.s32.totalorder 1, %s13
      %p106 = scmp.lt.s32.totalorder %s13, 3
      %p107 = pnand %p105, %p106
      %p108 = pneg %p107
      // Predicated region
      $region21: #{ccta_forward.1} parent=5 // pred_check
        _
      $region22: #{ccta_forward.1} parent=5 // pred_check_branch
        %110 = sbr.rel (%p107) target = $region24
      $region23: #{ccta_forward.1} parent=5 // pred_region
        %s111 = ssub.s32 %s13, 1
        %s112 = sand.u32 %s26, 1
        %s113 = scalar_lea.sflag [#allocation3], %s112
        %s114 = sand.u32 %s26, 1
        %s115 = smul.addr %s114, 64
        %s116 = scalar_lea.vmem [#allocation2], %s115
        // Predicated region
        $region25: #{ccta_forward.1} parent=23 // pred_check
          %p117 = pneg %p39
        $region26: #{ccta_forward.1} parent=23 // pred_check_branch
          %119 = sbr.rel (%p117) target = $region28
        $region27: #{ccta_forward.1} parent=23 // pred_region
          %120 = dma.done %s113, 1024
        $region28: #{ccta_forward.1} parent=23 // pred_fallthru
          _
        %s121 = sand.u32 %s26, 1
        %s122 = scalar_lea.sflag [#allocation3], %s121
        %s123 = sand.u32 %s26, 1
        %s124 = smul.addr %s123, 64
        %s125 = scalar_lea.vmem [#allocation2], %s124
        %p126 = pneg %p39
        %p127 = pneg %p36
        %p128 = pneg %p65
        %p129 = pneg %p62
        %s130 = sand.u32 %s52, 1
        %s131 = scalar_lea.sflag [#allocation4], %s130
        %s132 = sand.u32 %s52, 1
        %s133 = smul.addr %s132, 64
        %s134 = scalar_lea.vmem [#allocation5], %s133
        %v135 = vld [vmem:[%s116] sm:$0xff]
        %v136 = vld [vmem:[%s116 + $0x8] sm:$0xff]
        %v137 = vld [vmem:[%s116] ss:$4 sm:$0xff]
        %s138 = scalar_lea.vmem %s116, 32 [#allocation2]
        %v139 = vld [vmem:[%s138] ss:$4 sm:$0xff]
        %vm140 = vcmask 130048
        %v141 = vsel %vm140, %v135, -inf
        %v142 = vsel %vm140, %v136, -inf
        %v143 = vmax.f32 %v141, %v142
        %v144 = vrot.slane %v143, 4
        %v145 = vmax.f32 %v143, %v144
        %v146 = vrot.slane %v145, 2
        %v147 = vmax.f32 %v145, %v146
        %v148 = vrot.slane %v147, 1
        %v149 = vmax.f32 %v147, %v148
        %v150 = vsub.f32 %v135, %v149
        %v151 = vsub.f32 %v136, %v149
        %v152 = vmul.f32 %v150, 1.442695
        %v153 = vpow.pop %v152
        %v154 = vmul.f32 %v151, 1.442695
        %v155 = vpow.pop %v154
        %v156 = vsel %vm140, %v153, 0.0
        %v157 = vsel %vm140, %v155, 0.0
        %v158 = vadd.f32 %v156, %v157
        %v159 = vrot.slane %v158, 4
        %v160 = vadd.f32 %v158, %v159
        %v161 = vrot.slane %v160, 2
        %v162 = vadd.f32 %v160, %v161
        %v163 = vrot.slane %v162, 1
        %v164 = vadd.f32 %v162, %v163
        %v165 = vrcp.pop %v164
        %v166 = vmul.f32 %v153, %v165
        %v167 = vmul.f32 %v155, %v165
        %v168 = vsel %vm140, %v137, -inf
        %169 = vmax.xlane.f32.xlu0 %v168
        %v170 = vpop.xlane.xlu0 %169
        %v171 = vsel %vm140, %v139, -inf
        %172 = vmax.xlane.f32.xlu0 %v171
        %v173 = vpop.xlane.xlu0 %172
        %v174 = vsub.f32 %v137, %v170
        %v175 = vsub.f32 %v139, %v173
        %v176 = vmul.f32 %v174, 1.442695
        %v177 = vpow.pop %v176
        %v178 = vmul.f32 %v175, 1.442695
        %v179 = vpow.pop %v178
        %v180 = vsel %vm140, %v177, 0.0
        %181 = vadd.xlane.f32.xlu0 %v180
        %v182 = vpop.xlane.xlu0 %181
        %v183 = vsel %vm140, %v179, 0.0
        %184 = vadd.xlane.f32.xlu0 %v183
        %v185 = vpop.xlane.xlu0 %184
        %v186 = vrcp.pop %v182
        %v187 = vrcp.pop %v185
        %v188 = vmul.f32 %v177, %v186
        %v189 = vmul.f32 %v179, %v187
        %v190 = vmul.f32 %v188, %v166
        %v191 = vmul.f32 %v189, %v167
        %v192 = vmul.f32 %v190, 1.442695
        %v193 = vpow.pop %v192
        %v194 = vmul.f32 %v191, 1.442695
        %v195 = vpow.pop %v194
        %v196 = vmax.f32 %v188, %v166
        %v197 = vmax.f32 %v189, %v167
        %v198 = vadd.f32 %v193, %v196
        %v199 = vadd.f32 %v195, %v197
        %v200 = vadd.f32 %v198, %v135
        %v201 = vadd.f32 %v199, %v136
        %202 = vst.msk [vmem:[%s134] sm:$0xff] %vm140, %v200
        %203 = vst.msk [vmem:[%s134 + $0x8] sm:$0xff] %vm140, %v201
        %v204 = vld [vmem:[%s116 + $0x10] sm:$0xff]
        %v205 = vld [vmem:[%s116 + $0x18] sm:$0xff]
        %s206 = scalar_lea.vmem %s116, 1 [#allocation2]
        %v207 = vld [vmem:[%s206] ss:$4 sm:$0xff]
        %s208 = scalar_lea.vmem %s116, 33 [#allocation2]
        %v209 = vld [vmem:[%s208] ss:$4 sm:$0xff]
        %v210 = vsel %vm140, %v204, -inf
        %v211 = vsel %vm140, %v205, -inf
        %v212 = vmax.f32 %v210, %v211
        %v213 = vrot.slane %v212, 4
        %v214 = vmax.f32 %v212, %v213
        %v215 = vrot.slane %v214, 2
        %v216 = vmax.f32 %v214, %v215
        %v217 = vrot.slane %v216, 1
        %v218 = vmax.f32 %v216, %v217
        %v219 = vsub.f32 %v204, %v218
        %v220 = vsub.f32 %v205, %v218
        %v221 = vmul.f32 %v219, 1.442695
        %v222 = vpow.pop %v221
        %v223 = vmul.f32 %v220, 1.442695
        %v224 = vpow.pop %v223
        %v225 = vsel %vm140, %v222, 0.0
        %v226 = vsel %vm140, %v224, 0.0
        %v227 = vadd.f32 %v225, %v226
        %v228 = vrot.slane %v227, 4
        %v229 = vadd.f32 %v227, %v228
        %v230 = vrot.slane %v229, 2
        %v231 = vadd.f32 %v229, %v230
        %v232 = vrot.slane %v231, 1
        %v233 = vadd.f32 %v231, %v232
        %v234 = vrcp.pop %v233
        %v235 = vmul.f32 %v222, %v234
        %v236 = vmul.f32 %v224, %v234
        %v237 = vsel %vm140, %v207, -inf
        %238 = vmax.xlane.f32.xlu0 %v237
        %v239 = vpop.xlane.xlu0 %238
        %v240 = vsel %vm140, %v209, -inf
        %241 = vmax.xlane.f32.xlu0 %v240
        %v242 = vpop.xlane.xlu0 %241
        %v243 = vsub.f32 %v207, %v239
        %v244 = vsub.f32 %v209, %v242
        %v245 = vmul.f32 %v243, 1.442695
        %v246 = vpow.pop %v245
        %v247 = vmul.f32 %v244, 1.442695
        %v248 = vpow.pop %v247
        %v249 = vsel %vm140, %v246, 0.0
        %250 = vadd.xlane.f32.xlu0 %v249
        %v251 = vpop.xlane.xlu0 %250
        %v252 = vsel %vm140, %v248, 0.0
        %253 = vadd.xlane.f32.xlu0 %v252
        %v254 = vpop.xlane.xlu0 %253
        %v255 = vrcp.pop %v251
        %v256 = vrcp.pop %v254
        %v257 = vmul.f32 %v246, %v255
        %v258 = vmul.f32 %v248, %v256
        %v259 = vmul.f32 %v257, %v235
        %v260 = vmul.f32 %v258, %v236
        %v261 = vmul.f32 %v259, 1.442695
        %v262 = vpow.pop %v261
        %v263 = vmul.f32 %v260, 1.442695
        %v264 = vpow.pop %v263
        %v265 = vmax.f32 %v257, %v235
        %v266 = vmax.f32 %v258, %v236
        %v267 = vadd.f32 %v262, %v265
        %v268 = vadd.f32 %v264, %v266
        %v269 = vadd.f32 %v267, %v204
        %v270 = vadd.f32 %v268, %v205
        %271 = vst.msk [vmem:[%s134 + $0x10] sm:$0xff] %vm140, %v269
        %272 = vst.msk [vmem:[%s134 + $0x18] sm:$0xff] %vm140, %v270
        %v273 = vld [vmem:[%s116 + $0x20] sm:$0xff]
        %v274 = vld [vmem:[%s116 + $0x28] sm:$0xff]
        %s275 = scalar_lea.vmem %s116, 2 [#allocation2]
        %v276 = vld [vmem:[%s275] ss:$4 sm:$0xff]
        %s277 = scalar_lea.vmem %s116, 34 [#allocation2]
        %v278 = vld [vmem:[%s277] ss:$4 sm:$0xff]
        %v279 = vsel %vm140, %v273, -inf
        %v280 = vsel %vm140, %v274, -inf
        %v281 = vmax.f32 %v279, %v280
        %v282 = vrot.slane %v281, 4
        %v283 = vmax.f32 %v281, %v282
        %v284 = vrot.slane %v283, 2
        %v285 = vmax.f32 %v283, %v284
        %v286 = vrot.slane %v285, 1
        %v287 = vmax.f32 %v285, %v286
        %v288 = vsub.f32 %v273, %v287
        %v289 = vsub.f32 %v274, %v287
        %v290 = vmul.f32 %v288, 1.442695
        %v291 = vpow.pop %v290
        %v292 = vmul.f32 %v289, 1.442695
        %v293 = vpow.pop %v292
        %v294 = vsel %vm140, %v291, 0.0
        %v295 = vsel %vm140, %v293, 0.0
        %v296 = vadd.f32 %v294, %v295
        %v297 = vrot.slane %v296, 4
        %v298 = vadd.f32 %v296, %v297
        %v299 = vrot.slane %v298, 2
        %v300 = vadd.f32 %v298, %v299
        %v301 = vrot.slane %v300, 1
        %v302 = vadd.f32 %v300, %v301
        %v303 = vrcp.pop %v302
        %v304 = vmul.f32 %v291, %v303
        %v305 = vmul.f32 %v293, %v303
        %v306 = vsel %vm140, %v276, -inf
        %307 = vmax.xlane.f32.xlu0 %v306
        %v308 = vpop.xlane.xlu0 %307
        %v309 = vsel %vm140, %v278, -inf
        %310 = vmax.xlane.f32.xlu0 %v309
        %v311 = vpop.xlane.xlu0 %310
        %v312 = vsub.f32 %v276, %v308
        %v313 = vsub.f32 %v278, %v311
        %v314 = vmul.f32 %v312, 1.442695
        %v315 = vpow.pop %v314
        %v316 = vmul.f32 %v313, 1.442695
        %v317 = vpow.pop %v316
        %v318 = vsel %vm140, %v315, 0.0
        %319 = vadd.xlane.f32.xlu0 %v318
        %v320 = vpop.xlane.xlu0 %319
        %v321 = vsel %vm140, %v317, 0.0
        %322 = vadd.xlane.f32.xlu0 %v321
        %v323 = vpop.xlane.xlu0 %322
        %v324 = vrcp.pop %v320
        %v325 = vrcp.pop %v323
        %v326 = vmul.f32 %v315, %v324
        %v327 = vmul.f32 %v317, %v325
        %v328 = vmul.f32 %v326, %v304
        %v329 = vmul.f32 %v327, %v305
        %v330 = vmul.f32 %v328, 1.442695
        %v331 = vpow.pop %v330
        %v332 = vmul.f32 %v329, 1.442695
        %v333 = vpow.pop %v332
        %v334 = vmax.f32 %v326, %v304
        %v335 = vmax.f32 %v327, %v305
        %v336 = vadd.f32 %v331, %v334
        %v337 = vadd.f32 %v333, %v335
        %v338 = vadd.f32 %v336, %v273
        %v339 = vadd.f32 %v337, %v274
        %340 = vst.msk [vmem:[%s134 + $0x20] sm:$0xff] %vm140, %v338
        %341 = vst.msk [vmem:[%s134 + $0x28] sm:$0xff] %vm140, %v339
        %v342 = vld [vmem:[%s116 + $0x30] sm:$0xff]
        %v343 = vld [vmem:[%s116 + $0x38] sm:$0xff]
        %s344 = scalar_lea.vmem %s116, 3 [#allocation2]
        %v345 = vld [vmem:[%s344] ss:$4 sm:$0xff]
        %s346 = scalar_lea.vmem %s116, 35 [#allocation2]
        %v347 = vld [vmem:[%s346] ss:$4 sm:$0xff]
        %v348 = vsel %vm140, %v342, -inf
        %v349 = vsel %vm140, %v343, -inf
        %v350 = vmax.f32 %v348, %v349
        %v351 = vrot.slane %v350, 4
        %v352 = vmax.f32 %v350, %v351
        %v353 = vrot.slane %v352, 2
        %v354 = vmax.f32 %v352, %v353
        %v355 = vrot.slane %v354, 1
        %v356 = vmax.f32 %v354, %v355
        %v357 = vsub.f32 %v342, %v356
        %v358 = vsub.f32 %v343, %v356
        %v359 = vmul.f32 %v357, 1.442695
        %v360 = vpow.pop %v359
        %v361 = vmul.f32 %v358, 1.442695
        %v362 = vpow.pop %v361
        %v363 = vsel %vm140, %v360, 0.0
        %v364 = vsel %vm140, %v362, 0.0
        %v365 = vadd.f32 %v363, %v364
        %v366 = vrot.slane %v365, 4
        %v367 = vadd.f32 %v365, %v366
        %v368 = vrot.slane %v367, 2
        %v369 = vadd.f32 %v367, %v368
        %v370 = vrot.slane %v369, 1
        %v371 = vadd.f32 %v369, %v370
        %v372 = vrcp.pop %v371
        %v373 = vmul.f32 %v360, %v372
        %v374 = vmul.f32 %v362, %v372
        %v375 = vsel %vm140, %v345, -inf
        %376 = vmax.xlane.f32.xlu0 %v375
        %v377 = vpop.xlane.xlu0 %376
        %v378 = vsel %vm140, %v347, -inf
        %379 = vmax.xlane.f32.xlu0 %v378
        %v380 = vpop.xlane.xlu0 %379
        %v381 = vsub.f32 %v345, %v377
        %v382 = vsub.f32 %v347, %v380
        %v383 = vmul.f32 %v381, 1.442695
        %v384 = vpow.pop %v383
        %v385 = vmul.f32 %v382, 1.442695
        %v386 = vpow.pop %v385
        %v387 = vsel %vm140, %v384, 0.0
        %388 = vadd.xlane.f32.xlu0 %v387
        %v389 = vpop.xlane.xlu0 %388
        %v390 = vsel %vm140, %v386, 0.0
        %391 = vadd.xlane.f32.xlu0 %v390
        %v392 = vpop.xlane.xlu0 %391
        %v393 = vrcp.pop %v389
        %v394 = vrcp.pop %v392
        %v395 = vmul.f32 %v384, %v393
        %v396 = vmul.f32 %v386, %v394
        %v397 = vmul.f32 %v395, %v373
        %v398 = vmul.f32 %v396, %v374
        %v399 = vmul.f32 %v397, 1.442695
        %v400 = vpow.pop %v399
        %v401 = vmul.f32 %v398, 1.442695
        %v402 = vpow.pop %v401
        %v403 = vmax.f32 %v395, %v373
        %v404 = vmax.f32 %v396, %v374
        %v405 = vadd.f32 %v400, %v403
        %v406 = vadd.f32 %v402, %v404
        %v407 = vadd.f32 %v405, %v342
        %v408 = vadd.f32 %v406, %v343
        %409 = vst.msk [vmem:[%s134 + $0x30] sm:$0xff] %vm140, %v407
        %410 = vst.msk [vmem:[%s134 + $0x38] sm:$0xff] %vm140, %v408
        %s411 = sand.u32 %s52, 1
        %s412 = scalar_lea.sflag [#allocation4], %s411
        %s413 = sand.u32 %s52, 1
        %s414 = smul.addr %s413, 64
        %s415 = scalar_lea.vmem [#allocation5], %s414
        // Predicated region
        $region29: #{ccta_forward.1} parent=23 // pred_check
          %p416 = pneg %p62
        $region30: #{ccta_forward.1} parent=23 // pred_check_branch
          %418 = sbr.rel (%p416) target = $region32
        $region31: #{ccta_forward.1} parent=23 // pred_region
          %s420 = ssub.s32 1024, 1024
          %421 = vsyncadd %s412, %s420
          %s422 = smul.addr %s18, 8
          %s423 = smul.addr %s422, 128
          %s424 = scalar_lea.hbm %s1, %s423
          %s425 = sshll.u32 %s415, 4
          %s426 = int_to_ptr.vmem [resolvable:$true] %s425
          %431 = dma.vmem_to_hbm [thread:$0]  %s426, 1024, %s424, %s412, 128, 128, 8
        $region32: #{ccta_forward.1} parent=23 // pred_fallthru
          _
      $region24: #{ccta_forward.1} parent=5 // pred_fallthru
        _
      %p432 = scmp.le.s32.totalorder 2, %s13
      // Predicated region
      $region33: #{ccta_forward.1} parent=5 // pred_check
        %p433 = pneg %p432
      $region34: #{ccta_forward.1} parent=5 // pred_check_branch
        %435 = sbr.rel (%p433) target = $region36
      $region35: #{ccta_forward.1} parent=5 // pred_region
        %s436 = ssub.s32 %s13, 2
        // Predicated region
        $region37: #{ccta_forward.1} parent=35 // pred_check
          %p437 = pneg %p68
        $region38: #{ccta_forward.1} parent=35 // pred_check_branch
          %439 = sbr.rel (%p437) target = $region40
        $region39: #{ccta_forward.1} parent=35 // pred_region
          %s440 = sand.u32 %s53, 1
          %s441 = scalar_lea.sflag [#allocation4], %s440
          %s442 = sand.u32 %s53, 1
          %s443 = smul.addr %s442, 64
          %s444 = scalar_lea.vmem [#allocation5], %s443
          %445 = dma.done %s441, 1024
        $region40: #{ccta_forward.1} parent=35 // pred_fallthru
          _
      $region36: #{ccta_forward.1} parent=5 // pred_fallthru
        _
    $region6: #{ccta_forward.1} parent=1 // loop_footer
      %s17 = sadd.s32 1, %s13
    $region7: #{ccta_forward.1} parent=1 // loop_footer_branch
      %12 = sbr.rel target = $region3
    $region8: #{ccta_forward.1} parent=1 // loop_exit
      _
    %446 = vsyncpa [#allocation3], 1
    %s447 = scalar_lea.sflag [#allocation3], 1
    %448 = vsyncpa %s447, 1
    %449 = vsyncpa [#allocation4], 1
    %s450 = scalar_lea.sflag [#allocation4], 1
    %451 = vsyncpa %s450, 1

</llo_original>
